<compile_context>
chip_gen: v5e
topology: v5e:2x2
jax: 0.10.0
libtpu: 0.0.40
codegen_flags: <defaults>
</compile_context>

<pallas_src>
import math

import jax
import jax.numpy as jnp
from jax.experimental import pallas as pl
from jax.experimental.pallas import tpu as pltpu

_LANE = 128


def _round_up(a, m):
    return ((a + m - 1) // m) * m


def _cdiv(a, b):
    return -(-a // b)


def _sublane_multiple(dtype):
    # 8 for f32, 16 for bf16/f16, 32 for int8/fp8.
    itemsize = jnp.dtype(dtype).itemsize
    return max(8, 32 // itemsize)


def _rbf_kernel(x_ref, b_ref, o_ref):
    # bf16/f16 stay native (v6e/v7x VPU+EUP handle them); everything else f32.
    dt = jnp.dtype(x_ref.dtype)
    if dt in (jnp.dtype(jnp.bfloat16), jnp.dtype(jnp.float16)):
        cdt = dt
    else:
        cdt = jnp.dtype(jnp.float32)
    x = x_ref[...].astype(cdt)            # (tm, tc)
    b = b_ref[...].astype(cdt)            # (1, tc) -> broadcasts over rows
    diff = x - b
    neg_pi = jnp.asarray(-jnp.pi, dtype=cdt)
    # sub + mul + mul (VALU) + exp (EUP); cast is a no-op when dtypes match.
    o_ref[...] = jnp.exp(diff * diff * neg_pi).astype(o_ref.dtype)


def gaussian_rbf(x, b, *, row_tile=1024, lane_tile=512):
    """exp(-pi * (x - b)^2), b broadcast along the last axis of x."""
    orig_shape = x.shape
    D = orig_shape[-1]
    assert b.shape == (D,), f"b must have shape ({D},), got {b.shape}"
    dtype = x.dtype
    # b is tiny; keep it in x's dtype so the kernel computes natively
    # (bf16 end-to-end for bf16 I/O, f32 otherwise).
    b = b.astype(dtype)

    sub = _sublane_multiple(dtype)
    elem = jnp.dtype(dtype).itemsize
    lane_tile = max(_LANE, (lane_tile // _LANE) * _LANE)

    N = 1
    for s in orig_shape[:-1]:
        N *= s
    total = N * D

    # ---- choose a lane-dense 2-D view using only free reshapes ---------------
    if D % _LANE == 0:
        # Feature axis already lane-dense: use it directly.
        C, R = D, N
        X2 = x.reshape(N, D)
        B2 = b.reshape(1, D)
    else:
        g = math.gcd(D, _LANE)
        f0 = _LANE // g                     # rows per minimal lane-dense fold
        L = D * f0                          # lcm(D, 128)
        m = 0
        for cand in range(max(1, lane_tile // L), 0, -1):
            if N % (cand * f0) == 0:        # exact fold -> bitcast reshape
                m = cand
                break
        if m:
            C = m * L
            R = total // C
            X2 = x.reshape(R, C)            # free reshape, no copy
            B2 = jnp.tile(b, C // D).reshape(1, C)
        else:
            # Ragged row count: keep (N, D).  Lane axis is narrow (masked
            # stores) but there are no pad/slice HBM copies.
            C, R = D, N
            X2 = x.reshape(N, D)
            B2 = b.reshape(1, D)

    # ---- tile selection -------------------------------------------------------
    tc = C if C <= lane_tile else lane_tile          # multiple of 128 or full dim
    tc_vmem = _round_up(tc, _LANE)                   # lanes pad to 128 in VMEM
    target_elems = row_tile * lane_tile              # ~2 MiB f32 per block
    tm = max(sub, (target_elems // tc_vmem) // sub * sub)
    tm = min(tm, _round_up(R, sub))

    # MiB-scale slabs: guarantee a few grid steps (pipelining + both v7x TCs).
    slab_bytes = R * C * elem
    n_lane_blocks = _cdiv(C, tc)
    if slab_bytes > (1 << 20) and n_lane_blocks * _cdiv(R, tm) < 4:
        want_rows = min(_cdiv(R, sub), _cdiv(4, n_lane_blocks))
        if want_rows > 1:
            tm = min(tm, max(sub, _round_up(_cdiv(R, want_rows), sub)))

    grid = (_cdiv(R, tm), _cdiv(C, tc))

    out = pl.pallas_call(
        _rbf_kernel,
        out_shape=jax.ShapeDtypeStruct((R, C), dtype),
        grid_spec=pltpu.PrefetchScalarGridSpec(
            num_scalar_prefetch=0,
            grid=grid,
            in_specs=[
                pl.BlockSpec((tm, tc), lambda i, j: (i, j)),
                pl.BlockSpec((1, tc), lambda i, j: (0, j)),
            ],
            out_specs=pl.BlockSpec((tm, tc), lambda i, j: (i, j)),
        ),
        compiler_params=pltpu.CompilerParams(
            dimension_semantics=("parallel", "parallel"),
            vmem_limit_bytes=32 * 1024 * 1024,
        ),
    )(X2, B2)

    return out.reshape(orig_shape)


if __name__ == "__main__":
    key = jax.random.PRNGKey(0)

    def check(lead_shape, input_dim, k, dtype=jnp.float32, atol=1e-6, rtol=1e-6):
        kx, kb = jax.random.split(k)
        x = jax.random.normal(kx, lead_shape + (input_dim,), dtype=jnp.float32).astype(dtype)
        b = jax.random.normal(kb, (input_dim,), dtype=jnp.float32)
        y = jax.block_until_ready(gaussian_rbf(x, b))
        # Reference follows the kernel's documented cast of b to x.dtype.
        x32 = x.astype(jnp.float32)
        b32 = b.astype(dtype).astype(jnp.float32)
        y_ref = jnp.exp(-jnp.pi * (x32 - b32) ** 2)
        assert y.shape == x.shape and y.dtype == dtype
        assert jnp.allclose(y.astype(jnp.float32), y_ref, atol=atol, rtol=rtol), (
            lead_shape, input_dim, str(dtype))
        return jax.random.fold_in(k, 1)

    # Primary demo shape (batch=2, seq=8, input_dim=32): exact lane-dense fold.
    k = check((2, 8), 32, key)
    # Ragged flattened size (N=21, D=32): narrow-lane fallback, no pad copies.
    k = check((3, 7), 32, k)
    # Feature dim already a multiple of 128: feature axis used directly.
    k = check((2, 8), 256, k)
    # Awkward feature dim (96): lcm-folded into a 384-lane slab.
    k = check((2, 1024), 96, k)
    # Larger (>1 MiB) slab: exercises multi-block row grid / min-block logic.
    k = check((8, 2048), 96, k)
    # bf16 I/O: kernel computes natively in bf16 (loose tolerance for bf16).
    k = check((4, 256), 128, k, dtype=jnp.bfloat16, atol=3e-2, rtol=0.0)

    print("KERNEL_OK")
</pallas_src>

<mosaic_0001>
module attributes {stable_mosaic.version = 11 : i64} {
  func.func @_rbf_kernel(%arg0: i32, %arg1: i32, %arg2: memref<8x512xf32, #tpu.memory_space<vmem>>, %arg3: memref<1x512xf32, #tpu.memory_space<vmem>>, %arg4: memref<8x512xf32, #tpu.memory_space<vmem>>) attributes {dimension_semantics = [#tpu.dimension_semantics<parallel>, #tpu.dimension_semantics<parallel>], iteration_bounds = array<i64: 1, 1>, scalar_prefetch = 0 : i64, scratch_operands = 0 : i64, tpu.core_type = #tpu.core_type<tc>, window_params = [{transform_indices = @transform_0, window_bounds = array<i64: 8, 512>}, {transform_indices = @transform_1, window_bounds = array<i64: 1, 512>}, {transform_indices = @transform_2, window_bounds = array<i64: 8, 512>}]} {
    %c0 = arith.constant 0 : index
    %c0_0 = arith.constant 0 : index
    %0 = vector.load %arg2[%c0, %c0_0] : memref<8x512xf32, #tpu.memory_space<vmem>>, vector<8x512xf32>
    %c0_1 = arith.constant 0 : index
    %c0_2 = arith.constant 0 : index
    %1 = vector.load %arg3[%c0_1, %c0_2] : memref<1x512xf32, #tpu.memory_space<vmem>>, vector<1x512xf32>
    %2 = vector.broadcast %1 : vector<1x512xf32> to vector<8x512xf32>
    %3 = arith.subf %0, %2 : vector<8x512xf32>
    %4 = arith.mulf %3, %3 : vector<8x512xf32>
    %cst = arith.constant -3.14159274 : f32
    %5 = vector.broadcast %cst : f32 to vector<8x512xf32>
    %6 = arith.mulf %4, %5 : vector<8x512xf32>
    %7 = math.exp %6 : vector<8x512xf32>
    %c0_3 = arith.constant 0 : index
    %c0_4 = arith.constant 0 : index
    %8 = vector.load %arg4[%c0_3, %c0_4] : memref<8x512xf32, #tpu.memory_space<vmem>>, vector<8x512xf32>
    tpu.vector_store %arg4[%c0_3, %c0_4], %7 {strides = array<i32>} : memref<8x512xf32, #tpu.memory_space<vmem>>, vector<8x512xf32>,
    return
  }
  func.func @transform_0(%arg0: i32, %arg1: i32) -> (i32, i32) {
    %c0_i32 = arith.constant 0 : i32
    return %arg0, %arg1 : i32, i32
  }
  func.func @transform_1(%arg0: i32, %arg1: i32) -> (i32, i32) {
    %c0_i32 = arith.constant 0 : i32
    %c0_i32_0 = arith.constant 0 : i32
    return %c0_i32, %arg1 : i32, i32
  }
  func.func @transform_2(%arg0: i32, %arg1: i32) -> (i32, i32) {
    %c0_i32 = arith.constant 0 : i32
    return %arg0, %arg1 : i32, i32
  }
}

</mosaic_0001>

<llo_original>
// kernel: tpu_custom_call.1
$region0: #{tpu_custom_call.1}
  #allocation0 [shape = 'u32[]', space=smem, size = 0x4, offset = 0x4, fixed_abs, tag = 'smem constant byte address 0x4 - core index']
  #allocation1 [shape = 'u32[72,128]{1,0:T(1,128)}', space=vmem, size = 0x9000, scoped, tag = 'internal scratch']
  %s0 = inlined_call_operand.hbm [shape: f32[1,512], index: 0, kind: input, shape index: {}]
  %s1 = inlined_call_operand.hbm [shape: f32[1,512], index: 1, kind: input, shape index: {}]
  %s2 = inlined_call_operand.hbm [shape: f32[1,512], index: 2, kind: output, shape index: {}]
  %s3 = sld [smem:[#allocation0]]
  $region26: #{tpu_custom_call.1} parent=0
    _
  %s5 = ssub.s32 1, %s3
  %s6 = scalar_select 0, %s5, %s3
  $region1: #{tpu_custom_call.1} parent=0
    #allocation2 [shape = 'u8[16384]{0}', space=vmem, size = 0x4000, scoped, tag = 'input window, operand 0, single buffered']
    #allocation3 [shape = 's32[1]{0}', space=sflag, size = 0x4, scoped, tag = 'scoped memory for tpu_custom_call.1']
    #allocation4 [shape = 's32[1]{0}', space=sflag, size = 0x4, scoped, tag = 'scoped memory for tpu_custom_call.1']
    #allocation5 [shape = 'u8[2048]{0}', space=vmem, size = 0x800, scoped, tag = 'input window, operand 1, single buffered']
    #allocation6 [shape = 's32[1]{0}', space=sflag, size = 0x4, scoped, tag = 'scoped memory for tpu_custom_call.1']
    #allocation7 [shape = 'u8[16384]{0}', space=vmem, size = 0x4000, scoped, tag = 'output window, operand 0, single buffered']
    %7 = vsyncpa [#allocation3], 0
    %8 = vsyncpa [#allocation6], 0
    %9 = vsyncpa [#allocation4], 0
    // Predicated region
    $region2: #{tpu_custom_call.1} parent=1 // pred_check
      _
    $region3: #{tpu_custom_call.1} parent=1 // pred_check_branch
      %11 = sbr.rel (0) target = $region5
    $region4: #{tpu_custom_call.1} parent=1 // pred_region
      %13 = vsyncadd [#allocation3], 448
      %s14 = sshll.u32 %s0, 4
      %s15 = int_to_ptr.hbm [resolvable:$true] %s14
      %s16 = sshll.u32 [#allocation2], 4
      %s17 = int_to_ptr.vmem [resolvable:$true] %s16
      %22 = dma.hbm_to_vmem [thread:$0]  %s15, 64, %s17, [#allocation3], 64, 64, 4
    $region5: #{tpu_custom_call.1} parent=1 // pred_fallthru
      _
    // Predicated region
    $region6: #{tpu_custom_call.1} parent=1 // pred_check
      _
    $region7: #{tpu_custom_call.1} parent=1 // pred_check_branch
      %24 = sbr.rel (0) target = $region9
    $region8: #{tpu_custom_call.1} parent=1 // pred_region
      %26 = vsyncadd [#allocation6], 0
      %s28 = sshll.u32 %s1, 4
      %s29 = int_to_ptr.hbm [resolvable:$true] %s28
      %s30 = sshll.u32 [#allocation5], 4
      %s31 = int_to_ptr.vmem [resolvable:$true] %s30
      %33 = dma.hbm_to_vmem [thread:$0]  %s29, 64, %s31, [#allocation6]
    $region9: #{tpu_custom_call.1} parent=1 // pred_fallthru
      _
    // Predicated region
    $region10: #{tpu_custom_call.1} parent=1 // pred_check
      _
    $region11: #{tpu_custom_call.1} parent=1 // pred_check_branch
      %35 = sbr.rel (0) target = $region13
    $region12: #{tpu_custom_call.1} parent=1 // pred_region
      %37 = dma.done [#allocation3], 512
    $region13: #{tpu_custom_call.1} parent=1 // pred_fallthru
      _
    // Predicated region
    $region14: #{tpu_custom_call.1} parent=1 // pred_check
      _
    $region15: #{tpu_custom_call.1} parent=1 // pred_check_branch
      %39 = sbr.rel (0) target = $region17
    $region16: #{tpu_custom_call.1} parent=1 // pred_region
      %41 = dma.done [#allocation6], 64
    $region17: #{tpu_custom_call.1} parent=1 // pred_fallthru
      _
    %v42 = vld [vmem:[#allocation2] sm:$0xf]
    %v43 = vld [vmem:[#allocation2 + $0x4] sm:$0xf]
    %v44 = vld [vmem:[#allocation2 + $0x8] sm:$0xf]
    %v45 = vld [vmem:[#allocation2 + $0xc] sm:$0xf]
    %v46 = vld [vmem:[#allocation2 + $0x10] sm:$0xf]
    %v47 = vld [vmem:[#allocation2 + $0x14] sm:$0xf]
    %v48 = vld [vmem:[#allocation2 + $0x18] sm:$0xf]
    %v49 = vld [vmem:[#allocation2 + $0x1c] sm:$0xf]
    %v50 = vld [vmem:[#allocation5] sm:$0xf]
    %v52 = vperm.slane %v50, 0
    %v53 = vperm.slane %v50, 1
    %v54 = vperm.slane %v50, 2
    %v55 = vperm.slane %v50, 3
    %v56 = vrot.slane %v53, 7
    %v57 = vrot.slane %v54, 6
    %v58 = vrot.slane %v55, 5
    %vm59 = vcmask 1040384
    %v60 = vsel %vm59, %v52, %v56
    %vm61 = vcmask 1042434
    %v62 = vsel %vm61, %v57, %v58
    %vm63 = vcmask 1041408
    %v64 = vsel %vm63, %v60, %v62
    %vm65 = vcmask 1041409
    %v66 = vsel %vm65, %v52, %v56
    %vm67 = vcmask 1043459
    %v68 = vsel %vm67, %v57, %v58
    %vm69 = vcmask 1042433
    %v70 = vsel %vm69, %v66, %v68
    %v71 = vrot.slane %v70, 1
    %v72 = vsel %vm61, %v52, %v56
    %vm73 = vcmask 1044484
    %v74 = vsel %vm73, %v57, %v58
    %vm75 = vcmask 1043458
    %v76 = vsel %vm75, %v72, %v74
    %v77 = vrot.slane %v76, 2
    %v78 = vsel %vm67, %v52, %v56
    %vm79 = vcmask 1045509
    %v80 = vsel %vm79, %v57, %v58
    %vm81 = vcmask 1044483
    %v82 = vsel %vm81, %v78, %v80
    %v83 = vrot.slane %v82, 3
    %v84 = vsel %vm73, %v52, %v56
    %vm85 = vcmask 1046534
    %v86 = vsel %vm85, %v57, %v58
    %vm87 = vcmask 1045508
    %v88 = vsel %vm87, %v84, %v86
    %v89 = vrot.slane %v88, 4
    %v90 = vsel %vm79, %v52, %v56
    %vm91 = vcmask 1046528
    %v92 = vsel %vm91, %v58, %v57
    %vm93 = vcmask 1046533
    %v94 = vsel %vm93, %v90, %v92
    %v95 = vrot.slane %v94, 5
    %v96 = vsel %vm85, %v52, %v56
    %v97 = vsel %vm59, %v57, %v58
    %vm98 = vcmask 1045504
    %v99 = vsel %vm98, %v97, %v96
    %v100 = vrot.slane %v99, 6
    %v101 = vsel %vm91, %v56, %v52
    %v102 = vsel %vm65, %v57, %v58
    %vm103 = vcmask 1046529
    %v104 = vsel %vm103, %v102, %v101
    %v105 = vrot.slane %v104, 7
    %v114 = vsub.f32 %v42, %v64
    %v115 = vsub.f32 %v43, %v71
    %v116 = vsub.f32 %v44, %v77
    %v117 = vsub.f32 %v45, %v83
    %v118 = vsub.f32 %v46, %v89
    %v119 = vsub.f32 %v47, %v95
    %v120 = vsub.f32 %v48, %v100
    %v121 = vsub.f32 %v49, %v105
    %v122 = vmul.f32 %v114, %v114
    %v123 = vmul.f32 %v115, %v115
    %v124 = vmul.f32 %v116, %v116
    %v125 = vmul.f32 %v117, %v117
    %v126 = vmul.f32 %v118, %v118
    %v127 = vmul.f32 %v119, %v119
    %v128 = vmul.f32 %v120, %v120
    %v129 = vmul.f32 %v121, %v121
    %v130 = vmul.f32 %v122, -3.1415927
    %v131 = vmul.f32 %v123, -3.1415927
    %v132 = vmul.f32 %v124, -3.1415927
    %v133 = vmul.f32 %v125, -3.1415927
    %v134 = vmul.f32 %v126, -3.1415927
    %v135 = vmul.f32 %v127, -3.1415927
    %v136 = vmul.f32 %v128, -3.1415927
    %v137 = vmul.f32 %v129, -3.1415927
    %v138 = vmul.f32 %v130, 1.442695
    %v139 = vpow.pop %v138
    %v140 = vmul.f32 %v131, 1.442695
    %v141 = vpow.pop %v140
    %v142 = vmul.f32 %v132, 1.442695
    %v143 = vpow.pop %v142
    %v144 = vmul.f32 %v133, 1.442695
    %v145 = vpow.pop %v144
    %v146 = vmul.f32 %v134, 1.442695
    %v147 = vpow.pop %v146
    %v148 = vmul.f32 %v135, 1.442695
    %v149 = vpow.pop %v148
    %v150 = vmul.f32 %v136, 1.442695
    %v151 = vpow.pop %v150
    %v152 = vmul.f32 %v137, 1.442695
    %v153 = vpow.pop %v152
    %v154 = vlaneseq
    %vm155 = vcmp.ge.s32.totalorder %v154, 0
    %vm156 = vcmp.lt.s32.totalorder %v154, 512
    %vm157 = vmand %vm155, %vm156
    %158 = vst.msk [vmem:[#allocation7] sm:$0xf] %vm157, %v139
    %159 = vst.msk [vmem:[#allocation7 + $0x4] sm:$0xf] %vm157, %v141
    %160 = vst.msk [vmem:[#allocation7 + $0x8] sm:$0xf] %vm157, %v143
    %161 = vst.msk [vmem:[#allocation7 + $0xc] sm:$0xf] %vm157, %v145
    %162 = vst.msk [vmem:[#allocation7 + $0x10] sm:$0xf] %vm157, %v147
    %163 = vst.msk [vmem:[#allocation7 + $0x14] sm:$0xf] %vm157, %v149
    %164 = vst.msk [vmem:[#allocation7 + $0x18] sm:$0xf] %vm157, %v151
    %165 = vst.msk [vmem:[#allocation7 + $0x1c] sm:$0xf] %vm157, %v153
    // Predicated region
    $region18: #{tpu_custom_call.1} parent=1 // pred_check
      _
    $region19: #{tpu_custom_call.1} parent=1 // pred_check_branch
      %167 = sbr.rel (0) target = $region21
    $region20: #{tpu_custom_call.1} parent=1 // pred_region
      %169 = vsyncadd [#allocation4], 448
      %s170 = sshll.u32 [#allocation7], 4
      %s171 = int_to_ptr.vmem [resolvable:$true] %s170
      %s172 = sshll.u32 %s2, 4
      %s173 = int_to_ptr.hbm [resolvable:$true] %s172
      %178 = dma.vmem_to_hbm [thread:$0]  %s171, 64, %s173, [#allocation4], 64, 64, 4
    $region21: #{tpu_custom_call.1} parent=1 // pred_fallthru
      _
    // Predicated region
    $region22: #{tpu_custom_call.1} parent=1 // pred_check
      _
    $region23: #{tpu_custom_call.1} parent=1 // pred_check_branch
      %180 = sbr.rel (0) target = $region25
    $region24: #{tpu_custom_call.1} parent=1 // pred_region
      %182 = dma.done [#allocation4], 512
    $region25: #{tpu_custom_call.1} parent=1 // pred_fallthru
      _
    %183 = vsyncpa [#allocation3], 1
    %184 = vsyncpa [#allocation6], 1
    %185 = vsyncpa [#allocation4], 1

</llo_original>
